<compile_context>
chip_gen: v7x
topology: tpu7x:2x2x1
jax: 0.10.0
libtpu: 0.0.40
codegen_flags: <defaults>
</compile_context>

<pallas_src>
import functools
import math

import jax
import jax.numpy as jnp
from jax import lax
from jax.experimental import pallas as pl
from jax.experimental.pallas import tpu as pltpu


# ----------------------------------------------------------------------------
# Per-generation knobs (best-effort device sniff; defaults are v6e-like).
# ----------------------------------------------------------------------------
def _device_kind():
    try:
        return jax.devices()[0].device_kind.lower()
    except Exception:  # pragma: no cover - defensive
        return ""


_KIND = _device_kind()
_IS_V7 = "v7" in _KIND
_IS_V5E = ("v5 lite" in _KIND) or ("v5e" in _KIND) or ("v5litepod" in _KIND)

# Scoped-VMEM budget: v5e/v6e have 128 MiB physical, v7x only 64 MiB per TC.
_VMEM_LIMIT = (48 if _IS_V7 else 64) * 1024 * 1024
# bf16 GEMM tiles (fit comfortably double-buffered); keep 256 on v5e.
_GEMM_TILES = (256, 256, 512) if _IS_V5E else (512, 512, 512)
# Attention query tile: smaller on v7x (f32 [tq, Sk] intermediates, 64 MiB VMEM).
_ATTN_TQ = 128 if _IS_V7 else 256


def _round_up(x, m):
    return ((x + m - 1) // m) * m


def _pick_tile(dim, preferred, align):
    """Largest tile <= `preferred` that is a multiple of `align` and evenly
    divides `dim`.  A full dim is always a legal block, so small dims stay whole."""
    if dim <= preferred:
        return dim
    t = (preferred // align) * align
    while t >= align:
        if dim % t == 0:
            return t
        t -= align
    # TODO(synk): masked tails instead of an un-pipelined full-dim fallback.
    return dim


def _heads_per_group(num_heads, head_dim):
    """Smallest head-group size whose combined width is 128-lane aligned
    (a legal non-full BlockSpec last dim).  None if no such grouping exists."""
    for g in range(1, num_heads + 1):
        if num_heads % g == 0 and (g * head_dim) % 128 == 0:
            return g
    return None


# ----------------------------------------------------------------------------
# Kernel 1: tiled dense projection  y = x @ W + b   (bf16 operands, f32 acc)
# ----------------------------------------------------------------------------
def _linear_kernel(x_ref, w_ref, b_ref, o_ref, acc_ref):
    @pl.when(pl.program_id(2) == 0)
    def _():
        acc_ref[...] = jnp.zeros_like(acc_ref)

    acc_ref[...] += jnp.dot(x_ref[...], w_ref[...],
                            preferred_element_type=jnp.float32)

    @pl.when(pl.program_id(2) == pl.num_programs(2) - 1)
    def _():
        o_ref[...] = (acc_ref[...] + b_ref[...].astype(jnp.float32)).astype(o_ref.dtype)


def linear(x2d, w, b, *, out_dtype=None, tm=None, tn=None, tk=None):
    """x2d: [M, K], w: [K, N], b: [N] -> [M, N].  Tiled, double-buffered GEMM."""
    M, K = x2d.shape
    N = w.shape[1]
    if out_dtype is None:
        out_dtype = x2d.dtype
    d_tm, d_tn, d_tk = _GEMM_TILES
    tm = tm or d_tm
    tn = tn or d_tn
    tk = tk or d_tk

    # Pad rows to a sublane multiple so small / odd M still tiles cleanly.
    Mp = _round_up(M, 8)
    if Mp != M:
        x2d = jnp.pad(x2d, ((0, Mp - M), (0, 0)))

    tm = _pick_tile(Mp, tm, 8)
    tn = _pick_tile(N, tn, 128)
    tk = _pick_tile(K, tk, 128)
    grid = (Mp // tm, N // tn, K // tk)

    out = pl.pallas_call(
        _linear_kernel,
        out_shape=jax.ShapeDtypeStruct((Mp, N), out_dtype),
        grid=grid,
        in_specs=[
            pl.BlockSpec((tm, tk), lambda i, j, k: (i, k)),
            pl.BlockSpec((tk, tn), lambda i, j, k: (k, j)),
            pl.BlockSpec((1, tn), lambda i, j, k: (0, j)),
        ],
        out_specs=pl.BlockSpec((tm, tn), lambda i, j, k: (i, j)),
        scratch_shapes=[pltpu.VMEM((tm, tn), jnp.float32)],
        compiler_params=pltpu.CompilerParams(
            dimension_semantics=("parallel", "parallel", "arbitrary"),
            vmem_limit_bytes=_VMEM_LIMIT,
        ),
    )(x2d, w, b.reshape(1, N))
    return out[:M] if Mp != M else out


# ----------------------------------------------------------------------------
# Kernel 2: attention for one (batch, head-group, query-block) step.
# ----------------------------------------------------------------------------
def _attention_head(q_h, k_h, v_h, mask_f32):
    """q_h: [tq, D] (already scaled, bf16), k_h/v_h: [Sk, D] bf16, mask: [tq, Sk] f32."""
    # QK^T without a k transpose: contract last axes directly on the MXU.
    s = lax.dot_general(q_h, k_h, (((1,), (1,)), ((), ())),
                        preferred_element_type=jnp.float32)
    s = s + mask_f32
    mx = jnp.max(s, axis=-1, keepdims=True)
    p = jnp.exp(s - mx)
    denom = jnp.sum(p, axis=-1, keepdims=True)
    # Deferred normalization: scale the [tq, D] context, not the [tq, Sk] probs.
    ctx = jnp.dot(p.astype(v_h.dtype), v_h, preferred_element_type=jnp.float32)
    return ctx * pl.reciprocal(denom, approx=True)


def _mha_group_kernel(q_ref, k_ref, v_ref, m_ref, o_ref, *,
                      heads_per_group, head_dim, scale):
    """Lane-aligned head-group step: q/k/v/out blocks are [1, rows, g*D]."""
    q_blk = q_ref[0] * scale                                   # fold 1/sqrt(D) into q
    mask = jnp.broadcast_to(m_ref[0].astype(jnp.float32),
                            (q_blk.shape[0], m_ref.shape[2]))  # hoisted out of the loop
    for h in range(heads_per_group):                           # small (1-2) static unroll
        lo = h * head_dim
        hi = lo + head_dim
        ctx = _attention_head(q_blk[:, lo:hi], k_ref[0, :, lo:hi],
                              v_ref[0, :, lo:hi], mask)
        # TODO(synk): single concatenated full-width store once lane-unaligned
        # concatenate is verified on the target Mosaic toolchain.
        o_ref[0, :, lo:hi] = ctx.astype(o_ref.dtype)


def _mha_fused_kernel(q_ref, kv_ref, m_ref, o_ref, *, num_heads, head_dim, scale):
    """Fallback for small / non-128-aligned all_head: all heads in one step,
    K/V sliced out of the fused [Sk, 2*AH] block."""
    all_head = num_heads * head_dim
    q_blk = q_ref[0] * scale
    mask = jnp.broadcast_to(m_ref[0].astype(jnp.float32),
                            (q_blk.shape[0], m_ref.shape[2]))
    # TODO(synk): convert to lax.fori_loop for very large head counts.
    for h in range(num_heads):
        lo = h * head_dim
        hi = lo + head_dim
        ctx = _attention_head(q_blk[:, lo:hi], kv_ref[0, :, lo:hi],
                              kv_ref[0, :, all_head + lo:all_head + hi], mask)
        o_ref[0, :, lo:hi] = ctx.astype(o_ref.dtype)


def attention_core(q, kv, mask, *, num_heads, tq=None, out_dtype=jnp.float32):
    """Multi-head attention over lane-dense activations.

    q:    [B, Sq, AH] or None (then `kv` is packed [B, S, 3*AH] = q|k|v, self-attn)
    kv:   [B, Sk, 2*AH] (keys then values) or packed [B, S, 3*AH]
    mask: additive mask [B, 1|Sq, Sk] (f32)
    """
    packed = q is None
    B, Sk = kv.shape[0], kv.shape[1]
    if packed:
        all_head = kv.shape[2] // 3
        Sq = Sk
    else:
        all_head = q.shape[2]
        Sq = q.shape[1]
    head_dim = all_head // num_heads
    scale = 1.0 / math.sqrt(head_dim)
    if tq is None:
        tq = _ATTN_TQ

    # Pad queries to a sublane multiple; softmax is row-independent so padded
    # query rows cannot contaminate real rows (they are sliced away).
    Sq_pad = _round_up(Sq, 8)
    pad = Sq_pad - Sq
    if pad and packed:
        raise ValueError("packed qkv path requires seq_len % 8 == 0")
    if pad:
        q = jnp.pad(q, ((0, 0), (0, pad), (0, 0)))
        if mask.shape[1] != 1:
            mask = jnp.pad(mask, ((0, 0), (0, pad), (0, 0)))

    tq = _pick_tile(Sq_pad, tq, 8)
    nq = Sq_pad // tq
    per_q_mask = mask.shape[1] != 1
    mq_blk = tq if per_q_mask else 1

    g = _heads_per_group(num_heads, head_dim)

    if g is not None:
        # Head groups on the grid: lane-aligned blocks, the fused KV activation
        # is passed twice so K and V arrive pre-sliced in VMEM.
        gw = g * head_dim
        ng = all_head // gw
        if packed:
            q_arr, q_base, k_base, v_base = kv, 0, ng, 2 * ng
        else:
            q_arr, q_base, k_base, v_base = q, 0, 0, ng
        kernel = functools.partial(_mha_group_kernel, heads_per_group=g,
                                   head_dim=head_dim, scale=scale)
        if per_q_mask:
            mask_map = lambda b, gi, qi: (b, qi, 0)
        else:
            mask_map = lambda b, gi, qi: (b, 0, 0)
        grid = (B, ng, nq)
        in_specs = [
            pl.BlockSpec((1, tq, gw), lambda b, gi, qi: (b, qi, q_base + gi)),
            pl.BlockSpec((1, Sk, gw), lambda b, gi, qi: (b, 0, k_base + gi)),
            # TODO(synk): pipeline_mode=pl.Buffered(1) on the K/V specs and an
            # online-softmax Sk tiling for very long contexts on v7x.
            pl.BlockSpec((1, Sk, gw), lambda b, gi, qi: (b, 0, v_base + gi)),
            pl.BlockSpec((1, mq_blk, Sk), mask_map),
        ]
        out_spec = pl.BlockSpec((1, tq, gw), lambda b, gi, qi: (b, qi, gi))
        dims = ("parallel", "parallel", "parallel")
        args = (q_arr, kv, kv, mask)
    else:
        # Small / unaligned all_head: single group, fused KV block (full width).
        kernel = functools.partial(_mha_fused_kernel, num_heads=num_heads,
                                   head_dim=head_dim, scale=scale)
        if per_q_mask:
            mask_map = lambda b, qi: (b, qi, 0)
        else:
            mask_map = lambda b, qi: (b, 0, 0)
        grid = (B, nq)
        in_specs = [
            pl.BlockSpec((1, tq, all_head), lambda b, qi: (b, qi, 0)),
            pl.BlockSpec((1, Sk, 2 * all_head), lambda b, qi: (b, 0, 0)),
            pl.BlockSpec((1, mq_blk, Sk), mask_map),
        ]
        out_spec = pl.BlockSpec((1, tq, all_head), lambda b, qi: (b, qi, 0))
        dims = ("parallel", "parallel")
        args = (q, kv, mask)

    out = pl.pallas_call(
        kernel,
        out_shape=jax.ShapeDtypeStruct((B, Sq_pad, all_head), out_dtype),
        grid=grid,
        in_specs=in_specs,
        out_specs=out_spec,
        compiler_params=pltpu.CompilerParams(
            dimension_semantics=dims,
            vmem_limit_bytes=_VMEM_LIMIT,
        ),
    )(*args)
    return out[:, :Sq, :] if pad else out


# ----------------------------------------------------------------------------
# BertAttention forward (glue in plain JAX, hot paths in Pallas)
# ----------------------------------------------------------------------------
def prepare_params(raw, *, compute_dtype=jnp.bfloat16):
    """One-time parameter prep: fuse K/V (and Q/K/V when ctx_dim == hidden)
    projection weights and cast weights to the MXU compute dtype.  Biases stay
    f32 (added into the f32 accumulator)."""
    p = {
        "wq": raw["wq"].astype(compute_dtype),
        "bq": raw["bq"].astype(jnp.float32),
        "wkv": jnp.concatenate([raw["wk"], raw["wv"]], axis=1).astype(compute_dtype),
        "bkv": jnp.concatenate([raw["bk"], raw["bv"]], axis=0).astype(jnp.float32),
    }
    if raw["wq"].shape[0] == raw["wk"].shape[0]:
        p["wqkv"] = jnp.concatenate(
            [raw["wq"], raw["wk"], raw["wv"]], axis=1).astype(compute_dtype)
        p["bqkv"] = jnp.concatenate(
            [raw["bq"], raw["bk"], raw["bv"]], axis=0).astype(jnp.float32)
    return p


def _prepare_mask(attention_mask, B, Sq, Sk):
    """Additive mask of shape [B, 1, Sk] or [B, Sq, Sk] (f32) — the full
    [B, H, Sq, Sk] broadcast is never materialized in HBM."""
    if attention_mask is None:
        return jnp.zeros((B, 1, Sk), jnp.float32)
    m = jnp.asarray(attention_mask, jnp.float32)
    while m.ndim < 4:
        m = m[None]
    if m.shape[1] != 1:
        # TODO(synk): per-head additive masks would need a (1, H, tq, Sk) block.
        raise NotImplementedError("per-head attention masks are not supported")
    m = m[:, 0]
    qdim = 1 if m.shape[1] == 1 else Sq
    return jnp.broadcast_to(m, (B, qdim, Sk))


def bert_attention_forward(params, hidden_states, context=None, attention_mask=None,
                           *, num_heads):
    """
    hidden_states: [B, Sq, hidden]
    context:       [B, Sk, ctx_dim] or None (self-attention)
    attention_mask: additive, broadcastable to [B, H, Sq, Sk], head-independent
    returns:       [B, Sq, all_head_size] (f32)
    """
    if context is None:
        context = hidden_states
    B, Sq, hidden = hidden_states.shape
    Sk, ctx_dim = context.shape[1], context.shape[2]
    all_head = params["wq"].shape[1]
    head_dim = all_head // num_heads

    mask = _prepare_mask(attention_mask, B, Sq, Sk)
    x = hidden_states.astype(jnp.bfloat16).reshape(B * Sq, hidden)

    use_packed = (
        context is hidden_states
        and "wqkv" in params
        and _heads_per_group(num_heads, head_dim) is not None
        and Sq % 8 == 0
    )
    if use_packed:
        # Self-attention: one fused [hidden, 3*AH] GEMM, activations read once.
        qkv = linear(x, params["wqkv"], params["bqkv"], out_dtype=jnp.bfloat16)
        qkv = qkv.reshape(B, Sq, 3 * all_head)
        return attention_core(None, qkv, mask, num_heads=num_heads)

    c = context.astype(jnp.bfloat16).reshape(B * Sk, ctx_dim)
    q = linear(x, params["wq"], params["bq"], out_dtype=jnp.bfloat16)
    kv = linear(c, params["wkv"], params["bkv"], out_dtype=jnp.bfloat16)
    q = q.reshape(B, Sq, all_head)
    kv = kv.reshape(B, Sk, 2 * all_head)
    return attention_core(q, kv, mask, num_heads=num_heads)


# ----------------------------------------------------------------------------
# Pure-JAX reference (takes the raw f32 params)
# ----------------------------------------------------------------------------
def bert_attention_reference(params, hidden_states, context, attention_mask,
                             *, num_heads):
    B, Sq, _ = hidden_states.shape
    Sk = context.shape[1]
    all_head = params["wq"].shape[1]
    head_dim = all_head // num_heads

    q = hidden_states @ params["wq"] + params["bq"]
    k = context @ params["wk"] + params["bk"]
    v = context @ params["wv"] + params["bv"]
    q = q.reshape(B, Sq, num_heads, head_dim).transpose(0, 2, 1, 3)
    k = k.reshape(B, Sk, num_heads, head_dim).transpose(0, 2, 1, 3)
    v = v.reshape(B, Sk, num_heads, head_dim).transpose(0, 2, 1, 3)
    scores = jnp.einsum("bhqd,bhkd->bhqk", q, k) / math.sqrt(head_dim)
    if attention_mask is not None:
        scores = scores + attention_mask
    probs = jax.nn.softmax(scores, axis=-1)
    ctx = jnp.einsum("bhqk,bhkd->bhqd", probs, v)
    return ctx.transpose(0, 2, 1, 3).reshape(B, Sq, all_head)


if __name__ == "__main__":
    def make_params(key, hidden, ctx_dim, all_head):
        ks = jax.random.split(key, 6)
        s = 0.02
        return {
            "wq": s * jax.random.normal(ks[0], (hidden, all_head), jnp.float32),
            "bq": s * jax.random.normal(ks[1], (all_head,), jnp.float32),
            "wk": s * jax.random.normal(ks[2], (ctx_dim, all_head), jnp.float32),
            "bk": s * jax.random.normal(ks[3], (all_head,), jnp.float32),
            "wv": s * jax.random.normal(ks[4], (ctx_dim, all_head), jnp.float32),
            "bv": s * jax.random.normal(ks[5], (all_head,), jnp.float32),
        }

    def check(out, ref):
        err = float(jnp.max(jnp.abs(out - ref)))
        assert out.shape == ref.shape
        # bf16 MXU operands + approx reciprocal -> loosened tolerance
        assert jnp.allclose(out, ref, atol=2e-2, rtol=2e-2), f"max abs err {err}"

    root = jax.random.PRNGKey(0)

    # Case 1: cross-attention, tiny all_head (32) -> fused-KV single-group path.
    k1, k2, k3, kp = jax.random.split(root, 4)
    B, Sq, Sk, hidden, heads = 2, 8, 16, 32, 4
    raw1 = make_params(kp, hidden, hidden, hidden)
    prm1 = prepare_params(raw1)
    hs1 = jax.random.normal(k1, (B, Sq, hidden), jnp.float32)
    ctx1 = jax.random.normal(k2, (B, Sk, hidden), jnp.float32)
    m1 = jnp.where(jax.random.uniform(k3, (B, 1, 1, Sk)) > 0.2,
                   0.0, -10000.0).astype(jnp.float32)
    out1 = jax.block_until_ready(
        bert_attention_forward(prm1, hs1, ctx1, m1, num_heads=heads))
    check(out1, bert_attention_reference(raw1, hs1, ctx1, m1, num_heads=heads))

    # Case 2: cross-attention, ctx_dim != hidden, head_dim=64 -> head-group grid path.
    k1, k2, k3, kp = jax.random.split(jax.random.fold_in(root, 1), 4)
    B, Sq, Sk, hidden, ctx_dim, heads = 2, 8, 16, 256, 128, 4
    raw2 = make_params(kp, hidden, ctx_dim, hidden)
    prm2 = prepare_params(raw2)
    hs2 = jax.random.normal(k1, (B, Sq, hidden), jnp.float32)
    ctx2 = jax.random.normal(k2, (B, Sk, ctx_dim), jnp.float32)
    m2 = jnp.where(jax.random.uniform(k3, (B, 1, Sq, Sk)) > 0.2,
                   0.0, -10000.0).astype(jnp.float32)
    out2 = jax.block_until_ready(
        bert_attention_forward(prm2, hs2, ctx2, m2, num_heads=heads))
    check(out2, bert_attention_reference(raw2, hs2, ctx2, m2, num_heads=heads))

    # Case 3: self-attention (context is hidden_states) -> fused QKV GEMM path.
    k1, kp = jax.random.split(jax.random.fold_in(root, 2), 2)
    B, S, hidden, heads = 2, 16, 256, 4
    raw3 = make_params(kp, hidden, hidden, hidden)
    prm3 = prepare_params(raw3)
    hs3 = jax.random.normal(k1, (B, S, hidden), jnp.float32)
    out3 = jax.block_until_ready(
        bert_attention_forward(prm3, hs3, None, None, num_heads=heads))
    check(out3, bert_attention_reference(raw3, hs3, hs3, None, num_heads=heads))

    print("KERNEL_OK")
</pallas_src>

<mosaic_0001>
module attributes {stable_mosaic.version = 11 : i64} {
  func.func @_linear_kernel(%arg0: i32, %arg1: i32, %arg2: i32, %arg3: memref<16x32xbf16, #tpu.memory_space<vmem>>, %arg4: memref<32x32xbf16, #tpu.memory_space<vmem>>, %arg5: memref<1x32xf32, #tpu.memory_space<vmem>>, %arg6: memref<16x32xbf16, #tpu.memory_space<vmem>>, %arg7: memref<16x32xf32, #tpu.memory_space<vmem>>) attributes {dimension_semantics = [#tpu.dimension_semantics<parallel>, #tpu.dimension_semantics<parallel>, #tpu.dimension_semantics<arbitrary>], iteration_bounds = array<i64: 1, 1, 1>, scalar_prefetch = 0 : i64, scratch_operands = 1 : i64, tpu.core_type = #tpu.core_type<tc>, window_params = [{transform_indices = @transform_0, window_bounds = array<i64: 16, 32>}, {transform_indices = @transform_1, window_bounds = array<i64: 32, 32>}, {transform_indices = @transform_2, window_bounds = array<i64: 1, 32>}, {transform_indices = @transform_3, window_bounds = array<i64: 16, 32>}]} {
    %c0_i32 = arith.constant 0 : i32
    %0 = arith.cmpi eq, %arg2, %c0_i32 : i32
    %1 = arith.extui %0 : i1 to i32
    %c0_i32_0 = arith.constant 0 : i32
    %2 = arith.cmpi ne, %1, %c0_i32_0 : i32
    scf.if %2 {
      %cst_10 = arith.constant 0.000000e+00 : f32
      %12 = vector.broadcast %cst_10 : f32 to vector<16x32xf32>
      %c0_11 = arith.constant 0 : index
      %c0_12 = arith.constant 0 : index
      %13 = vector.load %arg7[%c0_11, %c0_12] : memref<16x32xf32, #tpu.memory_space<vmem>>, vector<16x32xf32>
      tpu.vector_store %arg7[%c0_11, %c0_12], %12 {strides = array<i32>} : memref<16x32xf32, #tpu.memory_space<vmem>>, vector<16x32xf32>,
    } else {
    }
    %c0 = arith.constant 0 : index
    %c0_1 = arith.constant 0 : index
    %3 = vector.load %arg7[%c0, %c0_1] : memref<16x32xf32, #tpu.memory_space<vmem>>, vector<16x32xf32>
    %c0_2 = arith.constant 0 : index
    %c0_3 = arith.constant 0 : index
    %4 = vector.load %arg3[%c0_2, %c0_3] : memref<16x32xbf16, #tpu.memory_space<vmem>>, vector<16x32xbf16>
    %c0_4 = arith.constant 0 : index
    %c0_5 = arith.constant 0 : index
    %5 = vector.load %arg4[%c0_4, %c0_5] : memref<32x32xbf16, #tpu.memory_space<vmem>>, vector<32x32xbf16>
    %cst = arith.constant dense<0.000000e+00> : vector<16x32xf32>
    %6 = tpu.matmul %4, %5, %cst {dimension_numbers = #tpu.dot_dimension_numbers<[1], [0], [0], [1], [0, 0, 1, 1], [], []>} : vector<16x32xbf16>, vector<32x32xbf16>, vector<16x32xf32> -> vector<16x32xf32>
    %7 = arith.addf %3, %6 : vector<16x32xf32>
    %c0_6 = arith.constant 0 : index
    %c0_7 = arith.constant 0 : index
    %8 = vector.load %arg7[%c0_6, %c0_7] : memref<16x32xf32, #tpu.memory_space<vmem>>, vector<16x32xf32>
    tpu.vector_store %arg7[%c0_6, %c0_7], %7 {strides = array<i32>} : memref<16x32xf32, #tpu.memory_space<vmem>>, vector<16x32xf32>,
    %c0_i32_8 = arith.constant 0 : i32
    %9 = arith.cmpi eq, %arg2, %c0_i32_8 : i32
    %10 = arith.extui %9 : i1 to i32
    %c0_i32_9 = arith.constant 0 : i32
    %11 = arith.cmpi ne, %10, %c0_i32_9 : i32
    scf.if %11 {
      %c0_10 = arith.constant 0 : index
      %c0_11 = arith.constant 0 : index
      %12 = vector.load %arg7[%c0_10, %c0_11] : memref<16x32xf32, #tpu.memory_space<vmem>>, vector<16x32xf32>
      %c0_12 = arith.constant 0 : index
      %c0_13 = arith.constant 0 : index
      %13 = vector.load %arg5[%c0_12, %c0_13] : memref<1x32xf32, #tpu.memory_space<vmem>>, vector<1x32xf32>
      %14 = vector.broadcast %13 : vector<1x32xf32> to vector<16x32xf32>
      %15 = arith.addf %12, %14 : vector<16x32xf32>
      %16 = arith.truncf %15 : vector<16x32xf32> to vector<16x32xbf16>
      %c0_14 = arith.constant 0 : index
      %c0_15 = arith.constant 0 : index
      %17 = vector.load %arg6[%c0_14, %c0_15] : memref<16x32xbf16, #tpu.memory_space<vmem>>, vector<16x32xbf16>
      tpu.vector_store %arg6[%c0_14, %c0_15], %16 {strides = array<i32>} : memref<16x32xbf16, #tpu.memory_space<vmem>>, vector<16x32xbf16>,
    } else {
    }
    return
  }
  func.func @transform_0(%arg0: i32, %arg1: i32, %arg2: i32) -> (i32, i32) {
    %c0_i32 = arith.constant 0 : i32
    return %arg0, %arg2 : i32, i32
  }
  func.func @transform_1(%arg0: i32, %arg1: i32, %arg2: i32) -> (i32, i32) {
    %c0_i32 = arith.constant 0 : i32
    return %arg2, %arg1 : i32, i32
  }
  func.func @transform_2(%arg0: i32, %arg1: i32, %arg2: i32) -> (i32, i32) {
    %c0_i32 = arith.constant 0 : i32
    %c0_i32_0 = arith.constant 0 : i32
    return %c0_i32, %arg1 : i32, i32
  }
  func.func @transform_3(%arg0: i32, %arg1: i32, %arg2: i32) -> (i32, i32) {
    %c0_i32 = arith.constant 0 : i32
    return %arg0, %arg1 : i32, i32
  }
}

</mosaic_0001>

<llo_original>
// kernel: tpu_custom_call.1
$region0: #{tpu_custom_call.1}
  #allocation0 [shape = 'u32[]', space=smem, size = 0x4, offset = 0x4, fixed_abs, tag = 'smem constant byte address 0x4 - core index']
  #allocation1 [shape = 'u32[144,128]{1,0:T(1,128)}', space=vmem, size = 0x12000, scoped, tag = 'internal scratch']
  #allocation2 [shape = 'f32[16,32]{1,0:T(8,128)}', space=vmem, size = 0x2000, scoped, tag = 'scratch operand']
  %s0 = inlined_call_operand.hbm [shape: bf16[16,32], index: 0, kind: input, shape index: {}]
  %s1 = inlined_call_operand.hbm [shape: bf16[32,32], index: 1, kind: input, shape index: {}]
  %s2 = inlined_call_operand.hbm [shape: f32[1,32], index: 2, kind: input, shape index: {}]
  %s3 = inlined_call_operand.hbm [shape: bf16[16,32], index: 3, kind: output, shape index: {}]
  %s4 = sld [smem:[#allocation0]]
  $region42: #{tpu_custom_call.1} parent=0
    _
  %s6 = ssub.s32 1, %s4
  %s7 = scalar_select 0, %s6, %s4
  $region1: #{tpu_custom_call.1} parent=0
    #allocation3 [shape = 'u8[4096]{0}', space=vmem, size = 0x1000, scoped, tag = 'input window, operand 0, single buffered']
    #allocation4 [shape = 's32[1]{0}', space=sflag, size = 0x4, scoped, tag = 'scoped memory for tpu_custom_call.1']
    #allocation5 [shape = 's32[1]{0}', space=sflag, size = 0x4, scoped, tag = 'scoped memory for tpu_custom_call.1']
    #allocation6 [shape = 'u8[8192]{0}', space=vmem, size = 0x2000, scoped, tag = 'input window, operand 1, single buffered']
    #allocation7 [shape = 's32[1]{0}', space=sflag, size = 0x4, scoped, tag = 'scoped memory for tpu_custom_call.1']
    #allocation8 [shape = 'u8[512]{0}', space=vmem, size = 0x400, scoped, tag = 'input window, operand 2, single buffered']
    #allocation9 [shape = 'u8[4096]{0}', space=vmem, size = 0x1000, scoped, tag = 'output window, operand 0, single buffered']
    %8 = vsyncpa [#allocation4], 0
    %9 = vsyncpa [#allocation7], 0
    %10 = vsyncpa [#allocation5], 0
    // Predicated region
    $region2: #{tpu_custom_call.1} parent=1 // pred_check
      _
    $region3: #{tpu_custom_call.1} parent=1 // pred_check_branch
      %12 = sbr.rel (0) target = $region5
    $region4: #{tpu_custom_call.1} parent=1 // pred_region
      %s14 = ssub.s32 128, 128
      %15 = vsyncadd [#allocation4], %s14
      %s16 = sshll.u32 [#allocation3], 4
      %s17 = int_to_ptr.vmem [resolvable:$true] %s16
      %22 = dma.hbm_to_vmem [thread:$0]  %s0, 128, %s17, [#allocation4], 64, 64, 4
    $region5: #{tpu_custom_call.1} parent=1 // pred_fallthru
      _
    // Predicated region
    $region6: #{tpu_custom_call.1} parent=1 // pred_check
      _
    $region7: #{tpu_custom_call.1} parent=1 // pred_check_branch
      %24 = sbr.rel (0) target = $region9
    $region8: #{tpu_custom_call.1} parent=1 // pred_region
      %s26 = ssub.s32 256, 256
      %27 = vsyncadd [#allocation7], %s26
      %s28 = sshll.u32 [#allocation6], 4
      %s29 = int_to_ptr.vmem [resolvable:$true] %s28
      %34 = dma.hbm_to_vmem [thread:$0]  %s1, 256, %s29, [#allocation7], 64, 64, 4
    $region9: #{tpu_custom_call.1} parent=1 // pred_fallthru
      _
    // Predicated region
    $region10: #{tpu_custom_call.1} parent=1 // pred_check
      _
    $region11: #{tpu_custom_call.1} parent=1 // pred_check_branch
      %36 = sbr.rel (0) target = $region13
    $region12: #{tpu_custom_call.1} parent=1 // pred_region
      %s38 = ssub.s32 16, 16
      %39 = vsyncadd [#allocation7], %s38
      %s41 = sshll.u32 [#allocation8], 4
      %s42 = int_to_ptr.vmem [resolvable:$true] %s41
      %44 = dma.hbm_to_vmem [thread:$0]  %s2, 16, %s42, [#allocation7]
    $region13: #{tpu_custom_call.1} parent=1 // pred_fallthru
      _
    // Predicated region
    $region14: #{tpu_custom_call.1} parent=1 // pred_check
      _
    $region15: #{tpu_custom_call.1} parent=1 // pred_check_branch
      %46 = sbr.rel (0) target = $region17
    $region16: #{tpu_custom_call.1} parent=1 // pred_region
      %47 = dma.done [#allocation4], 128
    $region17: #{tpu_custom_call.1} parent=1 // pred_fallthru
      _
    // Predicated region
    $region18: #{tpu_custom_call.1} parent=1 // pred_check
      _
    $region19: #{tpu_custom_call.1} parent=1 // pred_check_branch
      %49 = sbr.rel (0) target = $region21
    $region20: #{tpu_custom_call.1} parent=1 // pred_region
      %50 = dma.done [#allocation7], 256
    $region21: #{tpu_custom_call.1} parent=1 // pred_fallthru
      _
    // Predicated region
    $region22: #{tpu_custom_call.1} parent=1 // pred_check
      _
    $region23: #{tpu_custom_call.1} parent=1 // pred_check_branch
      %52 = sbr.rel (0) target = $region25
    $region24: #{tpu_custom_call.1} parent=1 // pred_region
      %53 = dma.done [#allocation7], 16
    $region25: #{tpu_custom_call.1} parent=1 // pred_fallthru
      _
    %p55 = scmp.eq.s32.totalorder 0, 0
    // Predicated region
    $region26: #{tpu_custom_call.1} parent=1 // pred_check
      %p56 = pneg %p55
    $region27: #{tpu_custom_call.1} parent=1 // pred_check_branch
      %58 = sbr.rel (%p56) target = $region29
    $region28: #{tpu_custom_call.1} parent=1 // pred_region
      %vm59 = vcmask 261120
      %60 = vst.msk [vmem:[#allocation2] sm:$0xff] %vm59, 0.0
      %61 = vst.msk [vmem:[#allocation2 + $0x8] sm:$0xff] %vm59, 0.0
    $region29: #{tpu_custom_call.1} parent=1 // pred_fallthru
      _
    %v62 = vld [vmem:[#allocation2] sm:$0xff]
    %v63 = vld [vmem:[#allocation2 + $0x8] sm:$0xff]
    %v64 = vld [vmem:[#allocation3] sm:$0xf]
    %v65 = vld [vmem:[#allocation3 + $0x4] sm:$0xf]
    %v66 = vld [vmem:[#allocation6] sm:$0xf]
    %v67 = vld [vmem:[#allocation6 + $0x4] sm:$0xf]
    %v68 = vld [vmem:[#allocation6 + $0x8] sm:$0xf]
    %v69 = vld [vmem:[#allocation6 + $0xc] sm:$0xf]
    %v72 = vunpack.c.l.b16 %v64
    %v73 = vunpack.c.l.b16 %v65
    %v74 = vpack.c.b16 %v73, %v72
    %v79 = vunpack.c.l.b16 %v66
    %v80 = vunpack.c.l.b16 %v67
    %v81 = vunpack.c.l.b16 %v68
    %v82 = vunpack.c.l.b16 %v69
    %v83 = vpack.c.b16 %v80, %v79
    %v84 = vpack.c.b16 %v82, %v81
    %vm87 = vcmask 261120
    %v89 = vsel %vm87, %v74, 0
    %91 = vmatprep.subr.bf16.mxu0 0
    %92 = vmatpush1.bf16.msra.mxu0 %v83
    %93 = vmatprep.subr.bf16.mxu0 0
    %94 = vmatpush1.bf16.msra.mxu0 %v84
    %95 = vmatprep.subr.bf16.mxu0 0
    %96 = vmatpush1.bf16.msra.mxu0 0
    %97 = vmatprep.subr.bf16.mxu0 0
    %98 = vmatpush1.bf16.msra.mxu0 0
    %99 = vmatprep.subr.bf16.mxu0 0
    %100 = vmatpush1.bf16.msra.mxu0 0
    %101 = vmatprep.subr.bf16.mxu0 0
    %102 = vmatpush1.bf16.msra.mxu0 0
    %103 = vmatprep.subr.bf16.mxu0 0
    %104 = vmatpush1.bf16.msra.mxu0 0
    %105 = vmatprep.subr.bf16.mxu0 0
    %106 = vmatpush1.bf16.msra.mxu0 0
    %107 = vmatprep.subr.bf16.mxu0 0
    %108 = vmatpush1.bf16.msra.mxu0 0
    %109 = vmatprep.subr.bf16.mxu0 0
    %110 = vmatpush1.bf16.msra.mxu0 0
    %111 = vmatprep.subr.bf16.mxu0 0
    %112 = vmatpush1.bf16.msra.mxu0 0
    %113 = vmatprep.subr.bf16.mxu0 0
    %114 = vmatpush1.bf16.msra.mxu0 0
    %115 = vmatprep.subr.bf16.mxu0 0
    %116 = vmatpush1.bf16.msra.mxu0 0
    %117 = vmatprep.subr.bf16.mxu0 0
    %118 = vmatpush1.bf16.msra.mxu0 0
    %119 = vmatprep.subr.bf16.mxu0 0
    %120 = vmatpush1.bf16.msra.mxu0 0
    %121 = vmatprep.subr.bf16.mxu0 0
    %122 = vmatpush1.bf16.msra.mxu0 0
    %123 = vmatprep.mubr.bf16.mxu0 0
    %124 = vmatmul.mubr.bf16.gmra.mrb[0].mxu0 %v89
    %v125 = vpop.f32.mrb[0].mxu0
    %v126 = vadd.f32 0.0, %v125
    %v127 = vpop.f32.mrb[0].mxu0
    %v128 = vpop.f32.mrb[0].mxu0
    %v129 = vadd.f32 0.0, %v128
    %v130 = vpop.f32.mrb[0].mxu0
    %131 = vdwg.mxu0
    %v132 = vadd.f32 %v62, %v126
    %v133 = vadd.f32 %v63, %v129
    %134 = vst.msk [vmem:[#allocation2] sm:$0xff] %vm87, %v132
    %135 = vst.msk [vmem:[#allocation2 + $0x8] sm:$0xff] %vm87, %v133
    // Predicated region
    $region30: #{tpu_custom_call.1} parent=1 // pred_check
      %p136 = pneg %p55
    $region31: #{tpu_custom_call.1} parent=1 // pred_check_branch
      %138 = sbr.rel (%p136) target = $region33
    $region32: #{tpu_custom_call.1} parent=1 // pred_region
      %v139 = vld [vmem:[#allocation2] sm:$0xff]
      %v140 = vld [vmem:[#allocation2 + $0x8] sm:$0xff]
      %v141 = vld [vmem:[#allocation8] sm:$0x1]
      %v143 = vlaneseq
      %v144 = vshrl.u32 %v143, 7
      %v145 = vsub.s32 0, %v144
      %v146 = vrot.slane %v141, %v145
      %v148 = vadd.f32 %v139, %v146
      %v149 = vadd.f32 %v140, %v146
      %v150 = vpack.c.bf16 %v149, %v148
      %v152 = vunpack.c.l.b16 %v150
      %v153 = vunpack.c.h.b16 %v150
      %v154 = vpack.c.b16 %v152, %v152
      %v155 = vpack.c.b16 %v153, %v153
      %vm158 = vcmask 257024
      %159 = vst.msk [vmem:[#allocation9] sm:$0xf] %vm158, %v154
      %160 = vst.msk [vmem:[#allocation9 + $0x4] sm:$0xf] %vm158, %v155
    $region33: #{tpu_custom_call.1} parent=1 // pred_fallthru
      _
    // Predicated region
    $region34: #{tpu_custom_call.1} parent=1 // pred_check
      _
    $region35: #{tpu_custom_call.1} parent=1 // pred_check_branch
      %162 = sbr.rel (0) target = $region37
    $region36: #{tpu_custom_call.1} parent=1 // pred_region
      %s164 = ssub.s32 128, 128
      %165 = vsyncadd [#allocation5], %s164
      %s166 = sshll.u32 [#allocation9], 4
      %s167 = int_to_ptr.vmem [resolvable:$true] %s166
      %172 = dma.vmem_to_hbm [thread:$0]  %s167, 128, %s3, [#allocation5], 64, 64, 4
    $region37: #{tpu_custom_call.1} parent=1 // pred_fallthru
      _
    // Predicated region
    $region38: #{tpu_custom_call.1} parent=1 // pred_check
      _
    $region39: #{tpu_custom_call.1} parent=1 // pred_check_branch
      %174 = sbr.rel (0) target = $region41
    $region40: #{tpu_custom_call.1} parent=1 // pred_region
      %175 = dma.done [#allocation5], 128
    $region41: #{tpu_custom_call.1} parent=1 // pred_fallthru
      _
    %176 = vsyncpa [#allocation4], 1
    %177 = vsyncpa [#allocation7], 1
    %178 = vsyncpa [#allocation5], 1

</llo_original>
